<compile_context>
chip_gen: v5e
topology: v5e:2x2
jax: 0.10.0
libtpu: 0.0.40
codegen_flags: <defaults>
</compile_context>

<pallas_src>
import functools

import jax
import jax.numpy as jnp
from jax import lax
from jax.experimental import pallas as pl
from jax.experimental.pallas import tpu as pltpu


def _attn_kernel(x_ref, wqkv_ref, wu_ref, bu_ref, bias_ref, o_ref, attn_ref,
                 *, heads, batch_per_step, inv_sqrt_e):
    bt, e = x_ref.shape
    h = heads
    bb = batch_per_step
    t = bt // bb

    x = x_ref[...]                                     # (bb*t, e) f32
    if wqkv_ref.dtype != x.dtype:                      # optional bf16 MXU path
        x = x.astype(wqkv_ref.dtype)

    # ONE fused projection matmul for q, k and v over every head and every
    # batch row in this grid step: (bb*t, e) @ (e, 3*h*e), f32 accumulation.
    qkv = jnp.dot(x, wqkv_ref[...], preferred_element_type=jnp.float32)

    for bi in range(bb):                               # static unroll (tiny bb)
        r0 = bi * t
        for hd in range(h):                            # static unroll
            q = qkv[r0:r0 + t, hd * e:(hd + 1) * e]
            k = qkv[r0:r0 + t, (h + hd) * e:(h + hd + 1) * e]
            v = qkv[r0:r0 + t, (2 * h + hd) * e:(2 * h + hd + 1) * e]

            # logits = q @ k^T (contract last dims, no transpose), scaled once
            # by 1/sqrt(e) (== PyTorch's q/e**.25 and k/e**.25), plus the
            # precomputed additive mask bias (external + causal).
            s = lax.dot_general(q, k, (((1,), (1,)), ((), ())),
                                preferred_element_type=jnp.float32)
            s = s * inv_sqrt_e + bias_ref[bi, hd]

            # Softmax over the key axis.  Reciprocal on the EUP slot (approx)
            # plus one Newton step keeps f32-level accuracy off the VPU
            # critical path.
            s = s - jnp.max(s, axis=-1, keepdims=True)
            p = jnp.exp(s)
            d = jnp.sum(p, axis=-1, keepdims=True)
            inv = pl.reciprocal(d, approx=True)
            inv = inv * (2.0 - d * inv)                # one Newton refinement
            p = p * inv

            # Slice-store this head into the (bb*t, h*e) scratch (masked vst)
            # instead of concatenating (lane relayout chains).
            attn_ref[r0:r0 + t, hd * e:(hd + 1) * e] = jnp.dot(
                p, v, preferred_element_type=jnp.float32)

    # unifyheads: one lane-dense (bb*t, h*e) @ (h*e, e) matmul + bias.
    attn = attn_ref[...]
    if wu_ref.dtype != attn.dtype:
        attn = attn.astype(wu_ref.dtype)
    out = jnp.dot(attn, wu_ref[...], preferred_element_type=jnp.float32)
    o_ref[...] = (out + bu_ref[...]).astype(o_ref.dtype)


def self_attention(x, wq, wk, wv, wu, bu, mask, *, heads, causal=False,
                   grid_steps=1, mxu_dtype=jnp.float32):
    """Forward of SelfAttention (PyTorch nn.Linear weight layouts).

    x    : (b, t, e) f32
    wq/wk/wv : (h*e, e)   -- nn.Linear(emb, emb*heads, bias=False).weight
    wu   : (e, h*e)       -- nn.Linear(heads*emb, emb).weight
    bu   : (e,)           -- unifyheads bias
    mask : (b*h, t, t), 0 => masked with -1e9
    grid_steps: 1 for single-TC chips (v5e/v6e); 2 on v7x (one step per TC).
    mxu_dtype : jnp.float32 (exact) or jnp.bfloat16 (native MXU operands on
                v6e/v7x; f32 accumulation is kept either way).
    """
    b, t, e = x.shape
    h = heads
    assert b % grid_steps == 0, "grid_steps must divide the batch"
    bb = b // grid_steps

    # Fused QKV weight slab (one MXU push / one DMA) and unify-heads slab.
    wqkv = jnp.concatenate([wq.T, wk.T, wv.T], axis=1).astype(mxu_dtype)
    wu_cat = wu.T.astype(mxu_dtype)                    # (h*e, e)
    bu2 = bu.reshape(1, e).astype(jnp.float32)

    # Additive attention bias: external mask (0 => -1e9), with the causal
    # (strictly upper-triangular => -inf) mask folded in when requested.
    # External mask overrides causal, matching the PyTorch op ordering.
    m4 = mask.reshape(b, h, t, t)
    if causal:
        row = lax.broadcasted_iota(jnp.int32, (1, 1, t, t), 2)
        col = lax.broadcasted_iota(jnp.int32, (1, 1, t, t), 3)
        causal_bias = jnp.where(col > row, -jnp.inf, 0.0).astype(jnp.float32)
    else:
        causal_bias = jnp.float32(0.0)
    bias = jnp.where(m4 == 0, jnp.float32(-1.0e9), causal_bias)

    x_flat = x.reshape(b * t, e).astype(jnp.float32)

    kernel = functools.partial(_attn_kernel, heads=h, batch_per_step=bb,
                               inv_sqrt_e=1.0 / (e ** 0.5))

    grid_spec = pltpu.PrefetchScalarGridSpec(
        num_scalar_prefetch=0,
        grid=(grid_steps,),
        in_specs=[
            pl.BlockSpec((bb * t, e), lambda i: (i, 0)),           # x (flat)
            pl.BlockSpec((e, 3 * h * e), lambda i: (0, 0)),        # wqkv slab
            pl.BlockSpec((h * e, e), lambda i: (0, 0)),            # wu slab
            pl.BlockSpec((1, e), lambda i: (0, 0)),                # unify bias
            pl.BlockSpec((bb, h, t, t), lambda i: (i, 0, 0, 0)),   # mask bias
        ],
        out_specs=pl.BlockSpec((bb * t, e), lambda i: (i, 0)),
        scratch_shapes=[pltpu.VMEM((bb * t, h * e), jnp.float32)],
    )

    out = pl.pallas_call(
        kernel,
        out_shape=jax.ShapeDtypeStruct((b * t, e), jnp.float32),
        grid_spec=grid_spec,
        compiler_params=pltpu.CompilerParams(
            dimension_semantics=("parallel",)),
    )(x_flat, wqkv, wu_cat, bu2, bias)
    return out.reshape(b, t, e)


def self_attention_ref(x, wq, wk, wv, wu, bu, mask, *, heads, causal=False):
    """Pure-JAX reference replicating the PyTorch forward exactly."""
    b, t, e = x.shape
    h = heads
    s = e ** 0.25
    q = (x @ wq.T).reshape(b, t, h, e).transpose(0, 2, 1, 3) / s
    k = (x @ wk.T).reshape(b, t, h, e).transpose(0, 2, 1, 3) / s
    v = (x @ wv.T).reshape(b, t, h, e).transpose(0, 2, 1, 3)
    dot = jnp.einsum('bhte,bhse->bhts', q, k)
    if causal:
        row = jnp.arange(t)[:, None]
        col = jnp.arange(t)[None, :]
        dot = jnp.where(col > row, -jnp.inf, dot)
    m = mask.reshape(b, h, t, t)
    dot = jnp.where(m == 0, -1.0e9, dot)
    p = jax.nn.softmax(dot, axis=-1)
    out = jnp.einsum('bhts,bhse->bhte', p, v)
    out = out.transpose(0, 2, 1, 3).reshape(b, t, h * e)
    return out @ wu.T + bu


if __name__ == "__main__":
    b, t, e, heads = 2, 8, 32, 4

    key = jax.random.PRNGKey(0)
    kx, kq, kk, kv, ku, kb, km = jax.random.split(key, 7)

    x = jax.random.normal(kx, (b, t, e), dtype=jnp.float32)
    # Parameters in PyTorch nn.Linear weight layout.
    wq = jax.random.normal(kq, (heads * e, e), dtype=jnp.float32) * 0.1
    wk = jax.random.normal(kk, (heads * e, e), dtype=jnp.float32) * 0.1
    wv = jax.random.normal(kv, (heads * e, e), dtype=jnp.float32) * 0.1
    wu = jax.random.normal(ku, (e, heads * e), dtype=jnp.float32) * 0.1
    bu = jax.random.normal(kb, (e,), dtype=jnp.float32) * 0.1
    # External attention mask (the `mask` forward arg): 0 => masked with -1e9.
    mask = (jax.random.uniform(km, (b * heads, t, t)) > 0.3).astype(jnp.int32)

    ref = self_attention_ref(x, wq, wk, wv, wu, bu, mask, heads=heads,
                             causal=False)

    # f32 path, single grid step (best for single-TensorCore v5e/v6e chips).
    out = self_attention(x, wq, wk, wv, wu, bu, mask, heads=heads,
                         causal=False, grid_steps=1)
    out = jax.block_until_ready(out)
    assert out.shape == (b, t, e)
    assert jnp.allclose(out, ref, rtol=1e-4, atol=1e-4), "mismatch vs reference"

    # bf16 MXU-operand path with 2 "parallel" grid steps (v7x: one per
    # TensorCore).  bf16 operands (f32 accumulation) -> relaxed tolerance.
    out_bf16 = self_attention(x, wq, wk, wv, wu, bu, mask, heads=heads,
                              causal=False, grid_steps=2,
                              mxu_dtype=jnp.bfloat16)
    out_bf16 = jax.block_until_ready(out_bf16)
    assert out_bf16.shape == (b, t, e)
    assert jnp.allclose(out_bf16, ref, rtol=5e-2, atol=5e-2), \
        "bf16 path mismatch vs reference"

    print("KERNEL_OK")
</pallas_src>

<mosaic_0001>
module attributes {stable_mosaic.version = 11 : i64} {
  func.func @_attn_kernel(%arg0: i32, %arg1: memref<16x32xf32, #tpu.memory_space<vmem>>, %arg2: memref<32x384xf32, #tpu.memory_space<vmem>>, %arg3: memref<128x32xf32, #tpu.memory_space<vmem>>, %arg4: memref<1x32xf32, #tpu.memory_space<vmem>>, %arg5: memref<2x4x8x8xf32, #tpu.memory_space<vmem>>, %arg6: memref<16x32xf32, #tpu.memory_space<vmem>>, %arg7: memref<16x128xf32, #tpu.memory_space<vmem>>) attributes {dimension_semantics = [#tpu.dimension_semantics<parallel>], iteration_bounds = array<i64: 1>, scalar_prefetch = 0 : i64, scratch_operands = 1 : i64, tpu.core_type = #tpu.core_type<tc>, window_params = [{transform_indices = @transform_0, window_bounds = array<i64: 16, 32>}, {pipeline_mode = #tpu.pipeline_mode<synchronous>, transform_indices = @transform_1, window_bounds = array<i64: 32, 384>}, {pipeline_mode = #tpu.pipeline_mode<synchronous>, transform_indices = @transform_2, window_bounds = array<i64: 128, 32>}, {pipeline_mode = #tpu.pipeline_mode<synchronous>, transform_indices = @transform_3, window_bounds = array<i64: 1, 32>}, {transform_indices = @transform_4, window_bounds = array<i64: 2, 4, 8, 8>}, {transform_indices = @transform_5, window_bounds = array<i64: 16, 32>}]} {
    %c0 = arith.constant 0 : index
    %c0_0 = arith.constant 0 : index
    %0 = vector.load %arg1[%c0, %c0_0] : memref<16x32xf32, #tpu.memory_space<vmem>>, vector<16x32xf32>
    %c0_1 = arith.constant 0 : index
    %c0_2 = arith.constant 0 : index
    %1 = vector.load %arg2[%c0_1, %c0_2] : memref<32x384xf32, #tpu.memory_space<vmem>>, vector<32x384xf32>
    %cst = arith.constant dense<0.000000e+00> : vector<16x384xf32>
    %2 = tpu.matmul %0, %1, %cst {dimension_numbers = #tpu.dot_dimension_numbers<[1], [0], [0], [1], [0, 0, 1, 1], [], []>} : vector<16x32xf32>, vector<32x384xf32>, vector<16x384xf32> -> vector<16x384xf32>
    %3 = vector.extract_strided_slice %2 {offsets = [0, 0], sizes = [8, 32], strides = [1, 1]} : vector<16x384xf32> to vector<8x32xf32>
    %4 = vector.extract_strided_slice %2 {offsets = [0, 128], sizes = [8, 32], strides = [1, 1]} : vector<16x384xf32> to vector<8x32xf32>
    %5 = vector.extract_strided_slice %2 {offsets = [0, 256], sizes = [8, 32], strides = [1, 1]} : vector<16x384xf32> to vector<8x32xf32>
    %cst_3 = arith.constant dense<0.000000e+00> : vector<8x8xf32>
    %6 = tpu.matmul %3, %4, %cst_3 {dimension_numbers = #tpu.dot_dimension_numbers<[1], [1], [0], [0], [0, 0, 1, 0], [], []>} : vector<8x32xf32>, vector<8x32xf32>, vector<8x8xf32> -> vector<8x8xf32>
    %cst_4 = arith.constant 0.176776692 : f32
    %7 = vector.broadcast %cst_4 : f32 to vector<8x8xf32>
    %8 = arith.mulf %6, %7 : vector<8x8xf32>
    %c0_5 = arith.constant 0 : index
    %c0_6 = arith.constant 0 : index
    %c0_7 = arith.constant 0 : index
    %c0_8 = arith.constant 0 : index
    %9 = vector.load %arg5[%c0_5, %c0_6, %c0_7, %c0_8] : memref<2x4x8x8xf32, #tpu.memory_space<vmem>>, vector<1x1x8x8xf32>
    %10 = vector.shape_cast %9 : vector<1x1x8x8xf32> to vector<8x8xf32>
    %11 = arith.addf %8, %10 : vector<8x8xf32>
    %cst_9 = arith.constant dense<0xFF800000> : vector<8xf32>
    %12 = vector.multi_reduction <maximumf>, %11, %cst_9 [1] : vector<8x8xf32> to vector<8xf32>
    %13 = vector.shape_cast %12 : vector<8xf32> to vector<8x1xf32>
    %14 = vector.broadcast %13 : vector<8x1xf32> to vector<8x8xf32>
    %15 = arith.subf %11, %14 : vector<8x8xf32>
    %16 = math.exp %15 : vector<8x8xf32>
    %cst_10 = arith.constant dense<0.000000e+00> : vector<8xf32>
    %17 = vector.multi_reduction <add>, %16, %cst_10 [1] : vector<8x8xf32> to vector<8xf32>
    %18 = vector.shape_cast %17 : vector<8xf32> to vector<8x1xf32>
    %19 = tpu.reciprocal %18 {approx = true} : vector<8x1xf32> -> vector<8x1xf32>
    %20 = arith.mulf %18, %19 : vector<8x1xf32>
    %cst_11 = arith.constant 2.000000e+00 : f32
    %21 = vector.broadcast %cst_11 : f32 to vector<8x1xf32>
    %22 = arith.subf %21, %20 : vector<8x1xf32>
    %23 = arith.mulf %19, %22 : vector<8x1xf32>
    %24 = vector.broadcast %23 : vector<8x1xf32> to vector<8x8xf32>
    %25 = arith.mulf %16, %24 : vector<8x8xf32>
    %cst_12 = arith.constant dense<0.000000e+00> : vector<8x32xf32>
    %26 = tpu.matmul %25, %5, %cst_12 {dimension_numbers = #tpu.dot_dimension_numbers<[1], [0], [0], [1], [0, 0, 1, 1], [], []>} : vector<8x8xf32>, vector<8x32xf32>, vector<8x32xf32> -> vector<8x32xf32>
    %c0_13 = arith.constant 0 : index
    %c0_14 = arith.constant 0 : index
    %27 = vector.load %arg7[%c0_13, %c0_14] : memref<16x128xf32, #tpu.memory_space<vmem>>, vector<8x32xf32>
    tpu.vector_store %arg7[%c0_13, %c0_14], %26 {strides = array<i32>} : memref<16x128xf32, #tpu.memory_space<vmem>>, vector<8x32xf32>,
    %28 = vector.extract_strided_slice %2 {offsets = [0, 32], sizes = [8, 32], strides = [1, 1]} : vector<16x384xf32> to vector<8x32xf32>
    %29 = vector.extract_strided_slice %2 {offsets = [0, 160], sizes = [8, 32], strides = [1, 1]} : vector<16x384xf32> to vector<8x32xf32>
    %30 = vector.extract_strided_slice %2 {offsets = [0, 288], sizes = [8, 32], strides = [1, 1]} : vector<16x384xf32> to vector<8x32xf32>
    %cst_15 = arith.constant dense<0.000000e+00> : vector<8x8xf32>
    %31 = tpu.matmul %28, %29, %cst_15 {dimension_numbers = #tpu.dot_dimension_numbers<[1], [1], [0], [0], [0, 0, 1, 0], [], []>} : vector<8x32xf32>, vector<8x32xf32>, vector<8x8xf32> -> vector<8x8xf32>
    %cst_16 = arith.constant 0.176776692 : f32
    %32 = vector.broadcast %cst_16 : f32 to vector<8x8xf32>
    %33 = arith.mulf %31, %32 : vector<8x8xf32>
    %c0_17 = arith.constant 0 : index
    %c1 = arith.constant 1 : index
    %c0_18 = arith.constant 0 : index
    %c0_19 = arith.constant 0 : index
    %34 = vector.load %arg5[%c0_17, %c1, %c0_18, %c0_19] : memref<2x4x8x8xf32, #tpu.memory_space<vmem>>, vector<1x1x8x8xf32>
    %35 = vector.shape_cast %34 : vector<1x1x8x8xf32> to vector<8x8xf32>
    %36 = arith.addf %33, %35 : vector<8x8xf32>
    %cst_20 = arith.constant dense<0xFF800000> : vector<8xf32>
    %37 = vector.multi_reduction <maximumf>, %36, %cst_20 [1] : vector<8x8xf32> to vector<8xf32>
    %38 = vector.shape_cast %37 : vector<8xf32> to vector<8x1xf32>
    %39 = vector.broadcast %38 : vector<8x1xf32> to vector<8x8xf32>
    %40 = arith.subf %36, %39 : vector<8x8xf32>
    %41 = math.exp %40 : vector<8x8xf32>
    %cst_21 = arith.constant dense<0.000000e+00> : vector<8xf32>
    %42 = vector.multi_reduction <add>, %41, %cst_21 [1] : vector<8x8xf32> to vector<8xf32>
    %43 = vector.shape_cast %42 : vector<8xf32> to vector<8x1xf32>
    %44 = tpu.reciprocal %43 {approx = true} : vector<8x1xf32> -> vector<8x1xf32>
    %45 = arith.mulf %43, %44 : vector<8x1xf32>
    %cst_22 = arith.constant 2.000000e+00 : f32
    %46 = vector.broadcast %cst_22 : f32 to vector<8x1xf32>
    %47 = arith.subf %46, %45 : vector<8x1xf32>
    %48 = arith.mulf %44, %47 : vector<8x1xf32>
    %49 = vector.broadcast %48 : vector<8x1xf32> to vector<8x8xf32>
    %50 = arith.mulf %41, %49 : vector<8x8xf32>
    %cst_23 = arith.constant dense<0.000000e+00> : vector<8x32xf32>
    %51 = tpu.matmul %50, %30, %cst_23 {dimension_numbers = #tpu.dot_dimension_numbers<[1], [0], [0], [1], [0, 0, 1, 1], [], []>} : vector<8x8xf32>, vector<8x32xf32>, vector<8x32xf32> -> vector<8x32xf32>
    %c0_24 = arith.constant 0 : index
    %c32 = arith.constant 32 : index
    %52 = vector.load %arg7[%c0_24, %c32] : memref<16x128xf32, #tpu.memory_space<vmem>>, vector<8x32xf32>
    tpu.vector_store %arg7[%c0_24, %c32], %51 {strides = array<i32>} : memref<16x128xf32, #tpu.memory_space<vmem>>, vector<8x32xf32>,
    %53 = vector.extract_strided_slice %2 {offsets = [0, 64], sizes = [8, 32], strides = [1, 1]} : vector<16x384xf32> to vector<8x32xf32>
    %54 = vector.extract_strided_slice %2 {offsets = [0, 192], sizes = [8, 32], strides = [1, 1]} : vector<16x384xf32> to vector<8x32xf32>
    %55 = vector.extract_strided_slice %2 {offsets = [0, 320], sizes = [8, 32], strides = [1, 1]} : vector<16x384xf32> to vector<8x32xf32>
    %cst_25 = arith.constant dense<0.000000e+00> : vector<8x8xf32>
    %56 = tpu.matmul %53, %54, %cst_25 {dimension_numbers = #tpu.dot_dimension_numbers<[1], [1], [0], [0], [0, 0, 1, 0], [], []>} : vector<8x32xf32>, vector<8x32xf32>, vector<8x8xf32> -> vector<8x8xf32>
    %cst_26 = arith.constant 0.176776692 : f32
    %57 = vector.broadcast %cst_26 : f32 to vector<8x8xf32>
    %58 = arith.mulf %56, %57 : vector<8x8xf32>
    %c0_27 = arith.constant 0 : index
    %c2 = arith.constant 2 : index
    %c0_28 = arith.constant 0 : index
    %c0_29 = arith.constant 0 : index
    %59 = vector.load %arg5[%c0_27, %c2, %c0_28, %c0_29] : memref<2x4x8x8xf32, #tpu.memory_space<vmem>>, vector<1x1x8x8xf32>
    %60 = vector.shape_cast %59 : vector<1x1x8x8xf32> to vector<8x8xf32>
    %61 = arith.addf %58, %60 : vector<8x8xf32>
    %cst_30 = arith.constant dense<0xFF800000> : vector<8xf32>
    %62 = vector.multi_reduction <maximumf>, %61, %cst_30 [1] : vector<8x8xf32> to vector<8xf32>
    %63 = vector.shape_cast %62 : vector<8xf32> to vector<8x1xf32>
    %64 = vector.broadcast %63 : vector<8x1xf32> to vector<8x8xf32>
    %65 = arith.subf %61, %64 : vector<8x8xf32>
    %66 = math.exp %65 : vector<8x8xf32>
    %cst_31 = arith.constant dense<0.000000e+00> : vector<8xf32>
    %67 = vector.multi_reduction <add>, %66, %cst_31 [1] : vector<8x8xf32> to vector<8xf32>
    %68 = vector.shape_cast %67 : vector<8xf32> to vector<8x1xf32>
    %69 = tpu.reciprocal %68 {approx = true} : vector<8x1xf32> -> vector<8x1xf32>
    %70 = arith.mulf %68, %69 : vector<8x1xf32>
    %cst_32 = arith.constant 2.000000e+00 : f32
    %71 = vector.broadcast %cst_32 : f32 to vector<8x1xf32>
    %72 = arith.subf %71, %70 : vector<8x1xf32>
    %73 = arith.mulf %69, %72 : vector<8x1xf32>
    %74 = vector.broadcast %73 : vector<8x1xf32> to vector<8x8xf32>
    %75 = arith.mulf %66, %74 : vector<8x8xf32>
    %cst_33 = arith.constant dense<0.000000e+00> : vector<8x32xf32>
    %76 = tpu.matmul %75, %55, %cst_33 {dimension_numbers = #tpu.dot_dimension_numbers<[1], [0], [0], [1], [0, 0, 1, 1], [], []>} : vector<8x8xf32>, vector<8x32xf32>, vector<8x32xf32> -> vector<8x32xf32>
    %c0_34 = arith.constant 0 : index
    %c64 = arith.constant 64 : index
    %77 = vector.load %arg7[%c0_34, %c64] : memref<16x128xf32, #tpu.memory_space<vmem>>, vector<8x32xf32>
    tpu.vector_store %arg7[%c0_34, %c64], %76 {strides = array<i32>} : memref<16x128xf32, #tpu.memory_space<vmem>>, vector<8x32xf32>,
    %78 = vector.extract_strided_slice %2 {offsets = [0, 96], sizes = [8, 32], strides = [1, 1]} : vector<16x384xf32> to vector<8x32xf32>
    %79 = vector.extract_strided_slice %2 {offsets = [0, 224], sizes = [8, 32], strides = [1, 1]} : vector<16x384xf32> to vector<8x32xf32>
    %80 = vector.extract_strided_slice %2 {offsets = [0, 352], sizes = [8, 32], strides = [1, 1]} : vector<16x384xf32> to vector<8x32xf32>
    %cst_35 = arith.constant dense<0.000000e+00> : vector<8x8xf32>
    %81 = tpu.matmul %78, %79, %cst_35 {dimension_numbers = #tpu.dot_dimension_numbers<[1], [1], [0], [0], [0, 0, 1, 0], [], []>} : vector<8x32xf32>, vector<8x32xf32>, vector<8x8xf32> -> vector<8x8xf32>
    %cst_36 = arith.constant 0.176776692 : f32
    %82 = vector.broadcast %cst_36 : f32 to vector<8x8xf32>
    %83 = arith.mulf %81, %82 : vector<8x8xf32>
    %c0_37 = arith.constant 0 : index
    %c3 = arith.constant 3 : index
    %c0_38 = arith.constant 0 : index
    %c0_39 = arith.constant 0 : index
    %84 = vector.load %arg5[%c0_37, %c3, %c0_38, %c0_39] : memref<2x4x8x8xf32, #tpu.memory_space<vmem>>, vector<1x1x8x8xf32>
    %85 = vector.shape_cast %84 : vector<1x1x8x8xf32> to vector<8x8xf32>
    %86 = arith.addf %83, %85 : vector<8x8xf32>
    %cst_40 = arith.constant dense<0xFF800000> : vector<8xf32>
    %87 = vector.multi_reduction <maximumf>, %86, %cst_40 [1] : vector<8x8xf32> to vector<8xf32>
    %88 = vector.shape_cast %87 : vector<8xf32> to vector<8x1xf32>
    %89 = vector.broadcast %88 : vector<8x1xf32> to vector<8x8xf32>
    %90 = arith.subf %86, %89 : vector<8x8xf32>
    %91 = math.exp %90 : vector<8x8xf32>
    %cst_41 = arith.constant dense<0.000000e+00> : vector<8xf32>
    %92 = vector.multi_reduction <add>, %91, %cst_41 [1] : vector<8x8xf32> to vector<8xf32>
    %93 = vector.shape_cast %92 : vector<8xf32> to vector<8x1xf32>
    %94 = tpu.reciprocal %93 {approx = true} : vector<8x1xf32> -> vector<8x1xf32>
    %95 = arith.mulf %93, %94 : vector<8x1xf32>
    %cst_42 = arith.constant 2.000000e+00 : f32
    %96 = vector.broadcast %cst_42 : f32 to vector<8x1xf32>
    %97 = arith.subf %96, %95 : vector<8x1xf32>
    %98 = arith.mulf %94, %97 : vector<8x1xf32>
    %99 = vector.broadcast %98 : vector<8x1xf32> to vector<8x8xf32>
    %100 = arith.mulf %91, %99 : vector<8x8xf32>
    %cst_43 = arith.constant dense<0.000000e+00> : vector<8x32xf32>
    %101 = tpu.matmul %100, %80, %cst_43 {dimension_numbers = #tpu.dot_dimension_numbers<[1], [0], [0], [1], [0, 0, 1, 1], [], []>} : vector<8x8xf32>, vector<8x32xf32>, vector<8x32xf32> -> vector<8x32xf32>
    %c0_44 = arith.constant 0 : index
    %c96 = arith.constant 96 : index
    %102 = vector.load %arg7[%c0_44, %c96] : memref<16x128xf32, #tpu.memory_space<vmem>>, vector<8x32xf32>
    tpu.vector_store %arg7[%c0_44, %c96], %101 {strides = array<i32>} : memref<16x128xf32, #tpu.memory_space<vmem>>, vector<8x32xf32>,
    %103 = vector.extract_strided_slice %2 {offsets = [8, 0], sizes = [8, 32], strides = [1, 1]} : vector<16x384xf32> to vector<8x32xf32>
    %104 = vector.extract_strided_slice %2 {offsets = [8, 128], sizes = [8, 32], strides = [1, 1]} : vector<16x384xf32> to vector<8x32xf32>
    %105 = vector.extract_strided_slice %2 {offsets = [8, 256], sizes = [8, 32], strides = [1, 1]} : vector<16x384xf32> to vector<8x32xf32>
    %cst_45 = arith.constant dense<0.000000e+00> : vector<8x8xf32>
    %106 = tpu.matmul %103, %104, %cst_45 {dimension_numbers = #tpu.dot_dimension_numbers<[1], [1], [0], [0], [0, 0, 1, 0], [], []>} : vector<8x32xf32>, vector<8x32xf32>, vector<8x8xf32> -> vector<8x8xf32>
    %cst_46 = arith.constant 0.176776692 : f32
    %107 = vector.broadcast %cst_46 : f32 to vector<8x8xf32>
    %108 = arith.mulf %106, %107 : vector<8x8xf32>
    %c1_47 = arith.constant 1 : index
    %c0_48 = arith.constant 0 : index
    %c0_49 = arith.constant 0 : index
    %c0_50 = arith.constant 0 : index
    %109 = vector.load %arg5[%c1_47, %c0_48, %c0_49, %c0_50] : memref<2x4x8x8xf32, #tpu.memory_space<vmem>>, vector<1x1x8x8xf32>
    %110 = vector.shape_cast %109 : vector<1x1x8x8xf32> to vector<8x8xf32>
    %111 = arith.addf %108, %110 : vector<8x8xf32>
    %cst_51 = arith.constant dense<0xFF800000> : vector<8xf32>
    %112 = vector.multi_reduction <maximumf>, %111, %cst_51 [1] : vector<8x8xf32> to vector<8xf32>
    %113 = vector.shape_cast %112 : vector<8xf32> to vector<8x1xf32>
    %114 = vector.broadcast %113 : vector<8x1xf32> to vector<8x8xf32>
    %115 = arith.subf %111, %114 : vector<8x8xf32>
    %116 = math.exp %115 : vector<8x8xf32>
    %cst_52 = arith.constant dense<0.000000e+00> : vector<8xf32>
    %117 = vector.multi_reduction <add>, %116, %cst_52 [1] : vector<8x8xf32> to vector<8xf32>
    %118 = vector.shape_cast %117 : vector<8xf32> to vector<8x1xf32>
    %119 = tpu.reciprocal %118 {approx = true} : vector<8x1xf32> -> vector<8x1xf32>
    %120 = arith.mulf %118, %119 : vector<8x1xf32>
    %cst_53 = arith.constant 2.000000e+00 : f32
    %121 = vector.broadcast %cst_53 : f32 to vector<8x1xf32>
    %122 = arith.subf %121, %120 : vector<8x1xf32>
    %123 = arith.mulf %119, %122 : vector<8x1xf32>
    %124 = vector.broadcast %123 : vector<8x1xf32> to vector<8x8xf32>
    %125 = arith.mulf %116, %124 : vector<8x8xf32>
    %cst_54 = arith.constant dense<0.000000e+00> : vector<8x32xf32>
    %126 = tpu.matmul %125, %105, %cst_54 {dimension_numbers = #tpu.dot_dimension_numbers<[1], [0], [0], [1], [0, 0, 1, 1], [], []>} : vector<8x8xf32>, vector<8x32xf32>, vector<8x32xf32> -> vector<8x32xf32>
    %c8 = arith.constant 8 : index
    %c0_55 = arith.constant 0 : index
    %127 = vector.load %arg7[%c8, %c0_55] : memref<16x128xf32, #tpu.memory_space<vmem>>, vector<8x32xf32>
    tpu.vector_store %arg7[%c8, %c0_55], %126 {strides = array<i32>} : memref<16x128xf32, #tpu.memory_space<vmem>>, vector<8x32xf32>,
    %128 = vector.extract_strided_slice %2 {offsets = [8, 32], sizes = [8, 32], strides = [1, 1]} : vector<16x384xf32> to vector<8x32xf32>
    %129 = vector.extract_strided_slice %2 {offsets = [8, 160], sizes = [8, 32], strides = [1, 1]} : vector<16x384xf32> to vector<8x32xf32>
    %130 = vector.extract_strided_slice %2 {offsets = [8, 288], sizes = [8, 32], strides = [1, 1]} : vector<16x384xf32> to vector<8x32xf32>
    %cst_56 = arith.constant dense<0.000000e+00> : vector<8x8xf32>
    %131 = tpu.matmul %128, %129, %cst_56 {dimension_numbers = #tpu.dot_dimension_numbers<[1], [1], [0], [0], [0, 0, 1, 0], [], []>} : vector<8x32xf32>, vector<8x32xf32>, vector<8x8xf32> -> vector<8x8xf32>
    %cst_57 = arith.constant 0.176776692 : f32
    %132 = vector.broadcast %cst_57 : f32 to vector<8x8xf32>
    %133 = arith.mulf %131, %132 : vector<8x8xf32>
    %c1_58 = arith.constant 1 : index
    %c1_59 = arith.constant 1 : index
    %c0_60 = arith.constant 0 : index
    %c0_61 = arith.constant 0 : index
    %134 = vector.load %arg5[%c1_58, %c1_59, %c0_60, %c0_61] : memref<2x4x8x8xf32, #tpu.memory_space<vmem>>, vector<1x1x8x8xf32>
    %135 = vector.shape_cast %134 : vector<1x1x8x8xf32> to vector<8x8xf32>
    %136 = arith.addf %133, %135 : vector<8x8xf32>
    %cst_62 = arith.constant dense<0xFF800000> : vector<8xf32>
    %137 = vector.multi_reduction <maximumf>, %136, %cst_62 [1] : vector<8x8xf32> to vector<8xf32>
    %138 = vector.shape_cast %137 : vector<8xf32> to vector<8x1xf32>
    %139 = vector.broadcast %138 : vector<8x1xf32> to vector<8x8xf32>
    %140 = arith.subf %136, %139 : vector<8x8xf32>
    %141 = math.exp %140 : vector<8x8xf32>
    %cst_63 = arith.constant dense<0.000000e+00> : vector<8xf32>
    %142 = vector.multi_reduction <add>, %141, %cst_63 [1] : vector<8x8xf32> to vector<8xf32>
    %143 = vector.shape_cast %142 : vector<8xf32> to vector<8x1xf32>
    %144 = tpu.reciprocal %143 {approx = true} : vector<8x1xf32> -> vector<8x1xf32>
    %145 = arith.mulf %143, %144 : vector<8x1xf32>
    %cst_64 = arith.constant 2.000000e+00 : f32
    %146 = vector.broadcast %cst_64 : f32 to vector<8x1xf32>
    %147 = arith.subf %146, %145 : vector<8x1xf32>
    %148 = arith.mulf %144, %147 : vector<8x1xf32>
    %149 = vector.broadcast %148 : vector<8x1xf32> to vector<8x8xf32>
    %150 = arith.mulf %141, %149 : vector<8x8xf32>
    %cst_65 = arith.constant dense<0.000000e+00> : vector<8x32xf32>
    %151 = tpu.matmul %150, %130, %cst_65 {dimension_numbers = #tpu.dot_dimension_numbers<[1], [0], [0], [1], [0, 0, 1, 1], [], []>} : vector<8x8xf32>, vector<8x32xf32>, vector<8x32xf32> -> vector<8x32xf32>
    %c8_66 = arith.constant 8 : index
    %c32_67 = arith.constant 32 : index
    %152 = vector.load %arg7[%c8_66, %c32_67] : memref<16x128xf32, #tpu.memory_space<vmem>>, vector<8x32xf32>
    tpu.vector_store %arg7[%c8_66, %c32_67], %151 {strides = array<i32>} : memref<16x128xf32, #tpu.memory_space<vmem>>, vector<8x32xf32>,
    %153 = vector.extract_strided_slice %2 {offsets = [8, 64], sizes = [8, 32], strides = [1, 1]} : vector<16x384xf32> to vector<8x32xf32>
    %154 = vector.extract_strided_slice %2 {offsets = [8, 192], sizes = [8, 32], strides = [1, 1]} : vector<16x384xf32> to vector<8x32xf32>
    %155 = vector.extract_strided_slice %2 {offsets = [8, 320], sizes = [8, 32], strides = [1, 1]} : vector<16x384xf32> to vector<8x32xf32>
    %cst_68 = arith.constant dense<0.000000e+00> : vector<8x8xf32>
    %156 = tpu.matmul %153, %154, %cst_68 {dimension_numbers = #tpu.dot_dimension_numbers<[1], [1], [0], [0], [0, 0, 1, 0], [], []>} : vector<8x32xf32>, vector<8x32xf32>, vector<8x8xf32> -> vector<8x8xf32>
    %cst_69 = arith.constant 0.176776692 : f32
    %157 = vector.broadcast %cst_69 : f32 to vector<8x8xf32>
    %158 = arith.mulf %156, %157 : vector<8x8xf32>
    %c1_70 = arith.constant 1 : index
    %c2_71 = arith.constant 2 : index
    %c0_72 = arith.constant 0 : index
    %c0_73 = arith.constant 0 : index
    %159 = vector.load %arg5[%c1_70, %c2_71, %c0_72, %c0_73] : memref<2x4x8x8xf32, #tpu.memory_space<vmem>>, vector<1x1x8x8xf32>
    %160 = vector.shape_cast %159 : vector<1x1x8x8xf32> to vector<8x8xf32>
    %161 = arith.addf %158, %160 : vector<8x8xf32>
    %cst_74 = arith.constant dense<0xFF800000> : vector<8xf32>
    %162 = vector.multi_reduction <maximumf>, %161, %cst_74 [1] : vector<8x8xf32> to vector<8xf32>
    %163 = vector.shape_cast %162 : vector<8xf32> to vector<8x1xf32>
    %164 = vector.broadcast %163 : vector<8x1xf32> to vector<8x8xf32>
    %165 = arith.subf %161, %164 : vector<8x8xf32>
    %166 = math.exp %165 : vector<8x8xf32>
    %cst_75 = arith.constant dense<0.000000e+00> : vector<8xf32>
    %167 = vector.multi_reduction <add>, %166, %cst_75 [1] : vector<8x8xf32> to vector<8xf32>
    %168 = vector.shape_cast %167 : vector<8xf32> to vector<8x1xf32>
    %169 = tpu.reciprocal %168 {approx = true} : vector<8x1xf32> -> vector<8x1xf32>
    %170 = arith.mulf %168, %169 : vector<8x1xf32>
    %cst_76 = arith.constant 2.000000e+00 : f32
    %171 = vector.broadcast %cst_76 : f32 to vector<8x1xf32>
    %172 = arith.subf %171, %170 : vector<8x1xf32>
    %173 = arith.mulf %169, %172 : vector<8x1xf32>
    %174 = vector.broadcast %173 : vector<8x1xf32> to vector<8x8xf32>
    %175 = arith.mulf %166, %174 : vector<8x8xf32>
    %cst_77 = arith.constant dense<0.000000e+00> : vector<8x32xf32>
    %176 = tpu.matmul %175, %155, %cst_77 {dimension_numbers = #tpu.dot_dimension_numbers<[1], [0], [0], [1], [0, 0, 1, 1], [], []>} : vector<8x8xf32>, vector<8x32xf32>, vector<8x32xf32> -> vector<8x32xf32>
    %c8_78 = arith.constant 8 : index
    %c64_79 = arith.constant 64 : index
    %177 = vector.load %arg7[%c8_78, %c64_79] : memref<16x128xf32, #tpu.memory_space<vmem>>, vector<8x32xf32>
    tpu.vector_store %arg7[%c8_78, %c64_79], %176 {strides = array<i32>} : memref<16x128xf32, #tpu.memory_space<vmem>>, vector<8x32xf32>,
    %178 = vector.extract_strided_slice %2 {offsets = [8, 96], sizes = [8, 32], strides = [1, 1]} : vector<16x384xf32> to vector<8x32xf32>
    %179 = vector.extract_strided_slice %2 {offsets = [8, 224], sizes = [8, 32], strides = [1, 1]} : vector<16x384xf32> to vector<8x32xf32>
    %180 = vector.extract_strided_slice %2 {offsets = [8, 352], sizes = [8, 32], strides = [1, 1]} : vector<16x384xf32> to vector<8x32xf32>
    %cst_80 = arith.constant dense<0.000000e+00> : vector<8x8xf32>
    %181 = tpu.matmul %178, %179, %cst_80 {dimension_numbers = #tpu.dot_dimension_numbers<[1], [1], [0], [0], [0, 0, 1, 0], [], []>} : vector<8x32xf32>, vector<8x32xf32>, vector<8x8xf32> -> vector<8x8xf32>
    %cst_81 = arith.constant 0.176776692 : f32
    %182 = vector.broadcast %cst_81 : f32 to vector<8x8xf32>
    %183 = arith.mulf %181, %182 : vector<8x8xf32>
    %c1_82 = arith.constant 1 : index
    %c3_83 = arith.constant 3 : index
    %c0_84 = arith.constant 0 : index
    %c0_85 = arith.constant 0 : index
    %184 = vector.load %arg5[%c1_82, %c3_83, %c0_84, %c0_85] : memref<2x4x8x8xf32, #tpu.memory_space<vmem>>, vector<1x1x8x8xf32>
    %185 = vector.shape_cast %184 : vector<1x1x8x8xf32> to vector<8x8xf32>
    %186 = arith.addf %183, %185 : vector<8x8xf32>
    %cst_86 = arith.constant dense<0xFF800000> : vector<8xf32>
    %187 = vector.multi_reduction <maximumf>, %186, %cst_86 [1] : vector<8x8xf32> to vector<8xf32>
    %188 = vector.shape_cast %187 : vector<8xf32> to vector<8x1xf32>
    %189 = vector.broadcast %188 : vector<8x1xf32> to vector<8x8xf32>
    %190 = arith.subf %186, %189 : vector<8x8xf32>
    %191 = math.exp %190 : vector<8x8xf32>
    %cst_87 = arith.constant dense<0.000000e+00> : vector<8xf32>
    %192 = vector.multi_reduction <add>, %191, %cst_87 [1] : vector<8x8xf32> to vector<8xf32>
    %193 = vector.shape_cast %192 : vector<8xf32> to vector<8x1xf32>
    %194 = tpu.reciprocal %193 {approx = true} : vector<8x1xf32> -> vector<8x1xf32>
    %195 = arith.mulf %193, %194 : vector<8x1xf32>
    %cst_88 = arith.constant 2.000000e+00 : f32
    %196 = vector.broadcast %cst_88 : f32 to vector<8x1xf32>
    %197 = arith.subf %196, %195 : vector<8x1xf32>
    %198 = arith.mulf %194, %197 : vector<8x1xf32>
    %199 = vector.broadcast %198 : vector<8x1xf32> to vector<8x8xf32>
    %200 = arith.mulf %191, %199 : vector<8x8xf32>
    %cst_89 = arith.constant dense<0.000000e+00> : vector<8x32xf32>
    %201 = tpu.matmul %200, %180, %cst_89 {dimension_numbers = #tpu.dot_dimension_numbers<[1], [0], [0], [1], [0, 0, 1, 1], [], []>} : vector<8x8xf32>, vector<8x32xf32>, vector<8x32xf32> -> vector<8x32xf32>
    %c8_90 = arith.constant 8 : index
    %c96_91 = arith.constant 96 : index
    %202 = vector.load %arg7[%c8_90, %c96_91] : memref<16x128xf32, #tpu.memory_space<vmem>>, vector<8x32xf32>
    tpu.vector_store %arg7[%c8_90, %c96_91], %201 {strides = array<i32>} : memref<16x128xf32, #tpu.memory_space<vmem>>, vector<8x32xf32>,
    %c0_92 = arith.constant 0 : index
    %c0_93 = arith.constant 0 : index
    %203 = vector.load %arg7[%c0_92, %c0_93] : memref<16x128xf32, #tpu.memory_space<vmem>>, vector<16x128xf32>
    %c0_94 = arith.constant 0 : index
    %c0_95 = arith.constant 0 : index
    %204 = vector.load %arg3[%c0_94, %c0_95] : memref<128x32xf32, #tpu.memory_space<vmem>>, vector<128x32xf32>
    %cst_96 = arith.constant dense<0.000000e+00> : vector<16x32xf32>
    %205 = tpu.matmul %203, %204, %cst_96 {dimension_numbers = #tpu.dot_dimension_numbers<[1], [0], [0], [1], [0, 0, 1, 1], [], []>} : vector<16x128xf32>, vector<128x32xf32>, vector<16x32xf32> -> vector<16x32xf32>
    %c0_97 = arith.constant 0 : index
    %c0_98 = arith.constant 0 : index
    %206 = vector.load %arg4[%c0_97, %c0_98] : memref<1x32xf32, #tpu.memory_space<vmem>>, vector<1x32xf32>
    %207 = vector.broadcast %206 : vector<1x32xf32> to vector<16x32xf32>
    %208 = arith.addf %205, %207 : vector<16x32xf32>
    %c0_99 = arith.constant 0 : index
    %c0_100 = arith.constant 0 : index
    %209 = vector.load %arg6[%c0_99, %c0_100] : memref<16x32xf32, #tpu.memory_space<vmem>>, vector<16x32xf32>
    tpu.vector_store %arg6[%c0_99, %c0_100], %208 {strides = array<i32>} : memref<16x32xf32, #tpu.memory_space<vmem>>, vector<16x32xf32>,
    return
  }
  func.func @transform_0(%arg0: i32) -> (i32, i32) {
    %c0_i32 = arith.constant 0 : i32
    %c0_i32_0 = arith.constant 0 : i32
    return %arg0, %c0_i32 : i32, i32
  }
  func.func @transform_1(%arg0: i32) -> (i32, i32) {
    %c0_i32 = arith.constant 0 : i32
    %c0_i32_0 = arith.constant 0 : i32
    %c0_i32_1 = arith.constant 0 : i32
    return %c0_i32, %c0_i32_0 : i32, i32
  }
  func.func @transform_2(%arg0: i32) -> (i32, i32) {
    %c0_i32 = arith.constant 0 : i32
    %c0_i32_0 = arith.constant 0 : i32
    %c0_i32_1 = arith.constant 0 : i32
    return %c0_i32, %c0_i32_0 : i32, i32
  }
  func.func @transform_3(%arg0: i32) -> (i32, i32) {
    %c0_i32 = arith.constant 0 : i32
    %c0_i32_0 = arith.constant 0 : i32
    %c0_i32_1 = arith.constant 0 : i32
    return %c0_i32, %c0_i32_0 : i32, i32
  }
  func.func @transform_4(%arg0: i32) -> (i32, i32, i32, i32) {
    %c0_i32 = arith.constant 0 : i32
    %c0_i32_0 = arith.constant 0 : i32
    %c0_i32_1 = arith.constant 0 : i32
    %c0_i32_2 = arith.constant 0 : i32
    return %arg0, %c0_i32, %c0_i32_0, %c0_i32_1 : i32, i32, i32, i32
  }
  func.func @transform_5(%arg0: i32) -> (i32, i32) {
    %c0_i32 = arith.constant 0 : i32
    %c0_i32_0 = arith.constant 0 : i32
    return %arg0, %c0_i32 : i32, i32
  }
}

</mosaic_0001>

<llo_original>
// kernel: tpu_custom_call.1
$region0: #{tpu_custom_call.1}
  #allocation0 [shape = 'u32[]', space=smem, size = 0x4, offset = 0x4, fixed_abs, tag = 'smem constant byte address 0x4 - core index']
  #allocation1 [shape = 'u32[72,128]{1,0:T(1,128)}', space=vmem, size = 0x9000, scoped, tag = 'internal scratch']
  #allocation2 [shape = 'f32[16,128]{1,0:T(8,128)}', space=vmem, size = 0x2000, scoped, tag = 'scratch operand']
  %s0 = inlined_call_operand.hbm [shape: f32[16,32], index: 0, kind: input, shape index: {}]
  %s1 = inlined_call_operand.vmem [shape: f32[32,384], index: 1, kind: input, shape index: {}]
  %s2 = inlined_call_operand.vmem [shape: f32[128,32], index: 2, kind: input, shape index: {}]
  %s3 = inlined_call_operand.vmem [shape: f32[1,32], index: 3, kind: input, shape index: {}]
  %s4 = inlined_call_operand.vmem [shape: f32[2,4,8,8], index: 4, kind: input, shape index: {}]
  %s5 = inlined_call_operand.hbm [shape: f32[16,32], index: 5, kind: output, shape index: {}]
  %s6 = sld [smem:[#allocation0]]
  $region34: #{tpu_custom_call.1} parent=0
    _
  %s8 = ssub.s32 1, %s6
  %s9 = scalar_select 0, %s8, %s6
  $region1: #{tpu_custom_call.1} parent=0
    #allocation3 [shape = 'u8[8192]{0}', space=vmem, size = 0x2000, scoped, tag = 'input window, operand 0, single buffered']
    #allocation4 [shape = 's32[1]{0}', space=sflag, size = 0x4, scoped, tag = 'scoped memory for tpu_custom_call.1']
    #allocation5 [shape = 's32[1]{0}', space=sflag, size = 0x4, scoped, tag = 'scoped memory for tpu_custom_call.1']
    #allocation6 [shape = 'u8[8192]{0}', space=vmem, size = 0x2000, scoped, tag = 'output window, operand 0, single buffered']
    %10 = vsyncpa [#allocation4], 0
    %11 = vsyncpa [#allocation5], 0
    // Predicated region
    $region2: #{tpu_custom_call.1} parent=1 // pred_check
      _
    $region3: #{tpu_custom_call.1} parent=1 // pred_check_branch
      %13 = sbr.rel (0) target = $region5
    $region4: #{tpu_custom_call.1} parent=1 // pred_region
      %15 = vsyncadd [#allocation4], 0
      %s16 = sshll.u32 %s0, 4
      %s17 = int_to_ptr.hbm [resolvable:$true] %s16
      %s18 = sshll.u32 [#allocation3], 4
      %s19 = int_to_ptr.vmem [resolvable:$true] %s18
      %24 = dma.hbm_to_vmem [thread:$0]  %s17, 256, %s19, [#allocation4], 128, 128, 8
    $region5: #{tpu_custom_call.1} parent=1 // pred_fallthru
      _
    // Predicated region
    $region6: #{tpu_custom_call.1} parent=1 // pred_check
      _
    $region7: #{tpu_custom_call.1} parent=1 // pred_check_branch
      %26 = sbr.rel (0) target = $region9
    $region8: #{tpu_custom_call.1} parent=1 // pred_region
      _
    $region9: #{tpu_custom_call.1} parent=1 // pred_fallthru
      _
    // Predicated region
    $region10: #{tpu_custom_call.1} parent=1 // pred_check
      _
    $region11: #{tpu_custom_call.1} parent=1 // pred_check_branch
      %28 = sbr.rel (0) target = $region13
    $region12: #{tpu_custom_call.1} parent=1 // pred_region
      _
    $region13: #{tpu_custom_call.1} parent=1 // pred_fallthru
      _
    // Predicated region
    $region14: #{tpu_custom_call.1} parent=1 // pred_check
      _
    $region15: #{tpu_custom_call.1} parent=1 // pred_check_branch
      %30 = sbr.rel (0) target = $region17
    $region16: #{tpu_custom_call.1} parent=1 // pred_region
      _
    $region17: #{tpu_custom_call.1} parent=1 // pred_fallthru
      _
    // Predicated region
    $region18: #{tpu_custom_call.1} parent=1 // pred_check
      _
    $region19: #{tpu_custom_call.1} parent=1 // pred_check_branch
      %32 = sbr.rel (0) target = $region21
    $region20: #{tpu_custom_call.1} parent=1 // pred_region
      _
    $region21: #{tpu_custom_call.1} parent=1 // pred_fallthru
      _
    // Predicated region
    $region22: #{tpu_custom_call.1} parent=1 // pred_check
      _
    $region23: #{tpu_custom_call.1} parent=1 // pred_check_branch
      %34 = sbr.rel (0) target = $region25
    $region24: #{tpu_custom_call.1} parent=1 // pred_region
      %36 = dma.done [#allocation4], 256
    $region25: #{tpu_custom_call.1} parent=1 // pred_fallthru
      _
    %v37 = vld [vmem:[#allocation3] sm:$0xff]
    %v38 = vld [vmem:[#allocation3 + $0x8] sm:$0xff]
    %v39 = vld [vmem:[%s1] sm:$0xff]
    %v40 = vld [vmem:[%s1 + $0x8] sm:$0xff]
    %v41 = vld [vmem:[%s1 + $0x10] sm:$0xff]
    %v42 = vld [vmem:[%s1 + $0x18] sm:$0xff]
    %v43 = vld [vmem:[%s1 + $0x20] sm:$0xff]
    %v44 = vld [vmem:[%s1 + $0x28] sm:$0xff]
    %v45 = vld [vmem:[%s1 + $0x30] sm:$0xff]
    %v46 = vld [vmem:[%s1 + $0x38] sm:$0xff]
    %v47 = vld [vmem:[%s1 + $0x40] sm:$0xff]
    %v48 = vld [vmem:[%s1 + $0x48] sm:$0xff]
    %v49 = vld [vmem:[%s1 + $0x50] sm:$0xff]
    %v50 = vld [vmem:[%s1 + $0x58] sm:$0xff]
    %vm51 = vcmask 261120
    %v53 = vsel %vm51, %v37, 0
    %v56 = vsel %vm51, %v38, 0
    %58 = vmatpush.msra.mxu0 0.0
    %59 = vmatpush.msra.mxu0 0.0
    %60 = vmatpush.msra.mxu0 0.0
    %61 = vmatpush.msra.mxu0 0.0
    %62 = vmatpush.msra.mxu0 0.0
    %63 = vmatpush.msra.mxu0 0.0
    %64 = vmatpush.msra.mxu0 0.0
    %65 = vmatpush.msra.mxu0 0.0
    %66 = vmatpush.msra.mxu0 0.0
    %67 = vmatpush.msra.mxu0 0.0
    %68 = vmatpush.msra.mxu0 0.0
    %69 = vmatpush.msra.mxu0 0.0
    %70 = vmatpush.msra.mxu0 %v48
    %71 = vmatpush.msra.mxu0 %v45
    %72 = vmatpush.msra.mxu0 %v42
    %73 = vmatpush.msra.mxu0 %v39
    %74 = vmatmul.f32.gmra.mxu0 %v53
    %v75 = vpop.f32.mrf.mxu0
    %v76 = vadd.f32 0.0, %v75
    %77 = vmatmul.f32.gmra.mxu0 %v56
    %v78 = vpop.f32.mrf.mxu0
    %v79 = vadd.f32 0.0, %v78
    %80 = vdwg.mxu0
    %81 = vmatpush.msra.mxu0 0.0
    %82 = vmatpush.msra.mxu0 0.0
    %83 = vmatpush.msra.mxu0 0.0
    %84 = vmatpush.msra.mxu0 0.0
    %85 = vmatpush.msra.mxu0 0.0
    %86 = vmatpush.msra.mxu0 0.0
    %87 = vmatpush.msra.mxu0 0.0
    %88 = vmatpush.msra.mxu0 0.0
    %89 = vmatpush.msra.mxu0 0.0
    %90 = vmatpush.msra.mxu0 0.0
    %91 = vmatpush.msra.mxu0 0.0
    %92 = vmatpush.msra.mxu0 0.0
    %93 = vmatpush.msra.mxu0 %v49
    %94 = vmatpush.msra.mxu0 %v46
    %95 = vmatpush.msra.mxu0 %v43
    %96 = vmatpush.msra.mxu0 %v40
    %97 = vmatmul.f32.gmra.mxu0 %v53
    %v98 = vpop.f32.mrf.mxu0
    %v99 = vadd.f32 0.0, %v98
    %100 = vmatmul.f32.gmra.mxu0 %v56
    %v101 = vpop.f32.mrf.mxu0
    %v102 = vadd.f32 0.0, %v101
    %103 = vdwg.mxu0
    %104 = vmatpush.msra.mxu0 0.0
    %105 = vmatpush.msra.mxu0 0.0
    %106 = vmatpush.msra.mxu0 0.0
    %107 = vmatpush.msra.mxu0 0.0
    %108 = vmatpush.msra.mxu0 0.0
    %109 = vmatpush.msra.mxu0 0.0
    %110 = vmatpush.msra.mxu0 0.0
    %111 = vmatpush.msra.mxu0 0.0
    %112 = vmatpush.msra.mxu0 0.0
    %113 = vmatpush.msra.mxu0 0.0
    %114 = vmatpush.msra.mxu0 0.0
    %115 = vmatpush.msra.mxu0 0.0
    %116 = vmatpush.msra.mxu0 %v50
    %117 = vmatpush.msra.mxu0 %v47
    %118 = vmatpush.msra.mxu0 %v44
    %119 = vmatpush.msra.mxu0 %v41
    %120 = vmatmul.f32.gmra.mxu0 %v53
    %v121 = vpop.f32.mrf.mxu0
    %v122 = vadd.f32 0.0, %v121
    %123 = vmatmul.f32.gmra.mxu0 %v56
    %v124 = vpop.f32.mrf.mxu0
    %v125 = vadd.f32 0.0, %v124
    %126 = vdwg.mxu0
    %v128 = vsel %vm51, %v76, 0
    %v131 = vsel %vm51, %v99, 0
    %133 = vmatpush.xpose.msra.mxu0 0.0
    %134 = vmatpush.xpose.msra.mxu0 0.0
    %135 = vmatpush.xpose.msra.mxu0 0.0
    %136 = vmatpush.xpose.msra.mxu0 0.0
    %137 = vmatpush.xpose.msra.mxu0 0.0
    %138 = vmatpush.xpose.msra.mxu0 0.0
    %139 = vmatpush.xpose.msra.mxu0 0.0
    %140 = vmatpush.xpose.msra.mxu0 0.0
    %141 = vmatpush.xpose.msra.mxu0 0.0
    %142 = vmatpush.xpose.msra.mxu0 0.0
    %143 = vmatpush.xpose.msra.mxu0 0.0
    %144 = vmatpush.xpose.msra.mxu0 0.0
    %145 = vmatpush.xpose.msra.mxu0 0.0
    %146 = vmatpush.xpose.msra.mxu0 0.0
    %147 = vmatpush.xpose.msra.mxu0 0.0
    %148 = vmatpush.xpose.msra.mxu0 %v131
    %149 = vmatmul.f32.gmra.mxu0 %v128
    %v150 = vpop.f32.mrf.mxu0
    %v151 = vadd.f32 0.0, %v150
    %152 = vdwg.mxu0
    %v153 = vmul.f32 %v151, 0.17677669
    %v154 = vld [vmem:[%s4] sm:$0xff]
    %v155 = vadd.f32 %v153, %v154
    %vm156 = vcmask 64512
    %v157 = vsel %vm156, %v155, -inf
    %158 = vmax.xlane.f32.xlu0 %v157
    %v159 = vpop.xlane.xlu0 %158
    %v160 = vsub.f32 %v155, %v159
    %v161 = vmul.f32 %v160, 1.442695
    %v162 = vpow.pop %v161
    %v163 = vsel %vm156, %v162, 0.0
    %164 = vadd.xlane.f32.xlu0 %v163
    %v165 = vpop.xlane.xlu0 %164
    %v166 = vrcp.pop %v165
    %v167 = vmul.f32 %v165, %v166
    %v168 = vsub.f32 2.0, %v167
    %v169 = vmul.f32 %v166, %v168
    %v170 = vmul.f32 %v162, %v169
    %v172 = vsel %vm156, %v170, 0
    %174 = vmatpush.msra.mxu0 0.0
    %175 = vmatpush.msra.mxu0 0.0
    %176 = vmatpush.msra.mxu0 0.0
    %177 = vmatpush.msra.mxu0 0.0
    %178 = vmatpush.msra.mxu0 0.0
    %179 = vmatpush.msra.mxu0 0.0
    %180 = vmatpush.msra.mxu0 0.0
    %181 = vmatpush.msra.mxu0 0.0
    %182 = vmatpush.msra.mxu0 0.0
    %183 = vmatpush.msra.mxu0 0.0
    %184 = vmatpush.msra.mxu0 0.0
    %185 = vmatpush.msra.mxu0 0.0
    %186 = vmatpush.msra.mxu0 0.0
    %187 = vmatpush.msra.mxu0 0.0
    %188 = vmatpush.msra.mxu0 0.0
    %189 = vmatpush.msra.mxu0 %v122
    %190 = vmatmul.f32.gmra.mxu0 %v172
    %v191 = vpop.f32.mrf.mxu0
    %v192 = vadd.f32 0.0, %v191
    %193 = vdwg.mxu0
    %194 = vst.msk [vmem:[#allocation2] sm:$0xff] %vm51, %v192
    %195 = vrot.lane.b32.xlu0 %v76, 96
    %v196 = vpop.permute.xlu0 %195
    %197 = vrot.lane.b32.xlu0 %v99, 96
    %v198 = vpop.permute.xlu0 %197
    %v199 = vsel %vm51, %v196, 0
    %v201 = vsel %vm51, %v198, 0
    %203 = vmatpush.xpose.msra.mxu0 0.0
    %204 = vmatpush.xpose.msra.mxu0 0.0
    %205 = vmatpush.xpose.msra.mxu0 0.0
    %206 = vmatpush.xpose.msra.mxu0 0.0
    %207 = vmatpush.xpose.msra.mxu0 0.0
    %208 = vmatpush.xpose.msra.mxu0 0.0
    %209 = vmatpush.xpose.msra.mxu0 0.0
    %210 = vmatpush.xpose.msra.mxu0 0.0
    %211 = vmatpush.xpose.msra.mxu0 0.0
    %212 = vmatpush.xpose.msra.mxu0 0.0
    %213 = vmatpush.xpose.msra.mxu0 0.0
    %214 = vmatpush.xpose.msra.mxu0 0.0
    %215 = vmatpush.xpose.msra.mxu0 0.0
    %216 = vmatpush.xpose.msra.mxu0 0.0
    %217 = vmatpush.xpose.msra.mxu0 0.0
    %218 = vmatpush.xpose.msra.mxu0 %v201
    %219 = vmatmul.f32.gmra.mxu0 %v199
    %v220 = vpop.f32.mrf.mxu0
    %v221 = vadd.f32 0.0, %v220
    %222 = vdwg.mxu0
    %v223 = vmul.f32 %v221, 0.17677669
    %s224 = scalar_lea.vmem %s4, 8
    %v225 = vld [vmem:[%s224] sm:$0xff]
    %v226 = vadd.f32 %v223, %v225
    %v227 = vsel %vm156, %v226, -inf
    %228 = vmax.xlane.f32.xlu0 %v227
    %v229 = vpop.xlane.xlu0 %228
    %v230 = vsub.f32 %v226, %v229
    %v231 = vmul.f32 %v230, 1.442695
    %v232 = vpow.pop %v231
    %v233 = vsel %vm156, %v232, 0.0
    %234 = vadd.xlane.f32.xlu0 %v233
    %v235 = vpop.xlane.xlu0 %234
    %v236 = vrcp.pop %v235
    %v237 = vmul.f32 %v235, %v236
    %v238 = vsub.f32 2.0, %v237
    %v239 = vmul.f32 %v236, %v238
    %v240 = vmul.f32 %v232, %v239
    %242 = vrot.lane.b32.xlu0 %v122, 96
    %v243 = vpop.permute.xlu0 %242
    %v246 = vsel %vm156, %v240, 0
    %248 = vmatpush.msra.mxu0 0.0
    %249 = vmatpush.msra.mxu0 0.0
    %250 = vmatpush.msra.mxu0 0.0
    %251 = vmatpush.msra.mxu0 0.0
    %252 = vmatpush.msra.mxu0 0.0
    %253 = vmatpush.msra.mxu0 0.0
    %254 = vmatpush.msra.mxu0 0.0
    %255 = vmatpush.msra.mxu0 0.0
    %256 = vmatpush.msra.mxu0 0.0
    %257 = vmatpush.msra.mxu0 0.0
    %258 = vmatpush.msra.mxu0 0.0
    %259 = vmatpush.msra.mxu0 0.0
    %260 = vmatpush.msra.mxu0 0.0
    %261 = vmatpush.msra.mxu0 0.0
    %262 = vmatpush.msra.mxu0 0.0
    %263 = vmatpush.msra.mxu0 %v243
    %264 = vmatmul.f32.gmra.mxu0 %v246
    %v265 = vpop.f32.mrf.mxu0
    %v266 = vadd.f32 0.0, %v265
    %267 = vdwg.mxu0
    %269 = vrot.lane.b32.xlu0 %v266, 32
    %v270 = vpop.permute.xlu0 %269
    %vm272 = vcmask 523520
    %273 = vst.msk [vmem:[#allocation2] sm:$0xff] %vm272, %v270
    %274 = vrot.lane.b32.xlu0 %v76, 64
    %v275 = vpop.permute.xlu0 %274
    %276 = vrot.lane.b32.xlu0 %v99, 64
    %v277 = vpop.permute.xlu0 %276
    %v278 = vsel %vm51, %v275, 0
    %v280 = vsel %vm51, %v277, 0
    %282 = vmatpush.xpose.msra.mxu0 0.0
    %283 = vmatpush.xpose.msra.mxu0 0.0
    %284 = vmatpush.xpose.msra.mxu0 0.0
    %285 = vmatpush.xpose.msra.mxu0 0.0
    %286 = vmatpush.xpose.msra.mxu0 0.0
    %287 = vmatpush.xpose.msra.mxu0 0.0
    %288 = vmatpush.xpose.msra.mxu0 0.0
    %289 = vmatpush.xpose.msra.mxu0 0.0
    %290 = vmatpush.xpose.msra.mxu0 0.0
    %291 = vmatpush.xpose.msra.mxu0 0.0
    %292 = vmatpush.xpose.msra.mxu0 0.0
    %293 = vmatpush.xpose.msra.mxu0 0.0
    %294 = vmatpush.xpose.msra.mxu0 0.0
    %295 = vmatpush.xpose.msra.mxu0 0.0
    %296 = vmatpush.xpose.msra.mxu0 0.0
    %297 = vmatpush.xpose.msra.mxu0 %v280
    %298 = vmatmul.f32.gmra.mxu0 %v278
    %v299 = vpop.f32.mrf.mxu0
    %v300 = vadd.f32 0.0, %v299
    %301 = vdwg.mxu0
    %v302 = vmul.f32 %v300, 0.17677669
    %s303 = scalar_lea.vmem %s4, 16
    %v304 = vld [vmem:[%s303] sm:$0xff]
    %v305 = vadd.f32 %v302, %v304
    %v306 = vsel %vm156, %v305, -inf
    %307 = vmax.xlane.f32.xlu0 %v306
    %v308 = vpop.xlane.xlu0 %307
    %v309 = vsub.f32 %v305, %v308
    %v310 = vmul.f32 %v309, 1.442695
    %v311 = vpow.pop %v310
    %v312 = vsel %vm156, %v311, 0.0
    %313 = vadd.xlane.f32.xlu0 %v312
    %v314 = vpop.xlane.xlu0 %313
    %v315 = vrcp.pop %v314
    %v316 = vmul.f32 %v314, %v315
    %v317 = vsub.f32 2.0, %v316
    %v318 = vmul.f32 %v315, %v317
    %v319 = vmul.f32 %v311, %v318
    %320 = vrot.lane.b32.xlu0 %v122, 64
    %v321 = vpop.permute.xlu0 %320
    %v324 = vsel %vm156, %v319, 0
    %326 = vmatpush.msra.mxu0 0.0
    %327 = vmatpush.msra.mxu0 0.0
    %328 = vmatpush.msra.mxu0 0.0
    %329 = vmatpush.msra.mxu0 0.0
    %330 = vmatpush.msra.mxu0 0.0
    %331 = vmatpush.msra.mxu0 0.0
    %332 = vmatpush.msra.mxu0 0.0
    %333 = vmatpush.msra.mxu0 0.0
    %334 = vmatpush.msra.mxu0 0.0
    %335 = vmatpush.msra.mxu0 0.0
    %336 = vmatpush.msra.mxu0 0.0
    %337 = vmatpush.msra.mxu0 0.0
    %338 = vmatpush.msra.mxu0 0.0
    %339 = vmatpush.msra.mxu0 0.0
    %340 = vmatpush.msra.mxu0 0.0
    %341 = vmatpush.msra.mxu0 %v321
    %342 = vmatmul.f32.gmra.mxu0 %v324
    %v343 = vpop.f32.mrf.mxu0
    %v344 = vadd.f32 0.0, %v343
    %345 = vdwg.mxu0
    %347 = vrot.lane.b32.xlu0 %v344, 64
    %v348 = vpop.permute.xlu0 %347
    %vm350 = vcmask 785920
    %351 = vst.msk [vmem:[#allocation2] sm:$0xff] %vm350, %v348
    %352 = vrot.lane.b32.xlu0 %v76, 32
    %v353 = vpop.permute.xlu0 %352
    %354 = vrot.lane.b32.xlu0 %v99, 32
    %v355 = vpop.permute.xlu0 %354
    %v356 = vsel %vm51, %v353, 0
    %v358 = vsel %vm51, %v355, 0
    %360 = vmatpush.xpose.msra.mxu0 0.0
    %361 = vmatpush.xpose.msra.mxu0 0.0
    %362 = vmatpush.xpose.msra.mxu0 0.0
    %363 = vmatpush.xpose.msra.mxu0 0.0
    %364 = vmatpush.xpose.msra.mxu0 0.0
    %365 = vmatpush.xpose.msra.mxu0 0.0
    %366 = vmatpush.xpose.msra.mxu0 0.0
    %367 = vmatpush.xpose.msra.mxu0 0.0
    %368 = vmatpush.xpose.msra.mxu0 0.0
    %369 = vmatpush.xpose.msra.mxu0 0.0
    %370 = vmatpush.xpose.msra.mxu0 0.0
    %371 = vmatpush.xpose.msra.mxu0 0.0
    %372 = vmatpush.xpose.msra.mxu0 0.0
    %373 = vmatpush.xpose.msra.mxu0 0.0
    %374 = vmatpush.xpose.msra.mxu0 0.0
    %375 = vmatpush.xpose.msra.mxu0 %v358
    %376 = vmatmul.f32.gmra.mxu0 %v356
    %v377 = vpop.f32.mrf.mxu0
    %v378 = vadd.f32 0.0, %v377
    %379 = vdwg.mxu0
    %v380 = vmul.f32 %v378, 0.17677669
    %s381 = scalar_lea.vmem %s4, 24
    %v382 = vld [vmem:[%s381] sm:$0xff]
    %v383 = vadd.f32 %v380, %v382
    %v384 = vsel %vm156, %v383, -inf
    %385 = vmax.xlane.f32.xlu0 %v384
    %v386 = vpop.xlane.xlu0 %385
    %v387 = vsub.f32 %v383, %v386
    %v388 = vmul.f32 %v387, 1.442695
    %v389 = vpow.pop %v388
    %v390 = vsel %vm156, %v389, 0.0
    %391 = vadd.xlane.f32.xlu0 %v390
    %v392 = vpop.xlane.xlu0 %391
    %v393 = vrcp.pop %v392
    %v394 = vmul.f32 %v392, %v393
    %v395 = vsub.f32 2.0, %v394
    %v396 = vmul.f32 %v393, %v395
    %v397 = vmul.f32 %v389, %v396
    %398 = vrot.lane.b32.xlu0 %v122, 32
    %v399 = vpop.permute.xlu0 %398
    %v402 = vsel %vm156, %v397, 0
    %404 = vmatpush.msra.mxu0 0.0
    %405 = vmatpush.msra.mxu0 0.0
    %406 = vmatpush.msra.mxu0 0.0
    %407 = vmatpush.msra.mxu0 0.0
    %408 = vmatpush.msra.mxu0 0.0
    %409 = vmatpush.msra.mxu0 0.0
    %410 = vmatpush.msra.mxu0 0.0
    %411 = vmatpush.msra.mxu0 0.0
    %412 = vmatpush.msra.mxu0 0.0
    %413 = vmatpush.msra.mxu0 0.0
    %414 = vmatpush.msra.mxu0 0.0
    %415 = vmatpush.msra.mxu0 0.0
    %416 = vmatpush.msra.mxu0 0.0
    %417 = vmatpush.msra.mxu0 0.0
    %418 = vmatpush.msra.mxu0 0.0
    %419 = vmatpush.msra.mxu0 %v399
    %420 = vmatmul.f32.gmra.mxu0 %v402
    %v421 = vpop.f32.mrf.mxu0
    %v422 = vadd.f32 0.0, %v421
    %423 = vdwg.mxu0
    %425 = vrot.lane.b32.xlu0 %v422, 96
    %v426 = vpop.permute.xlu0 %425
    %vm428 = vcmask 1048320
    %429 = vst.msk [vmem:[#allocation2] sm:$0xff] %vm428, %v426
    %v431 = vsel %vm51, %v79, 0
    %v434 = vsel %vm51, %v102, 0
    %436 = vmatpush.xpose.msra.mxu0 0.0
    %437 = vmatpush.xpose.msra.mxu0 0.0
    %438 = vmatpush.xpose.msra.mxu0 0.0
    %439 = vmatpush.xpose.msra.mxu0 0.0
    %440 = vmatpush.xpose.msra.mxu0 0.0
    %441 = vmatpush.xpose.msra.mxu0 0.0
    %442 = vmatpush.xpose.msra.mxu0 0.0
    %443 = vmatpush.xpose.msra.mxu0 0.0
    %444 = vmatpush.xpose.msra.mxu0 0.0
    %445 = vmatpush.xpose.msra.mxu0 0.0
    %446 = vmatpush.xpose.msra.mxu0 0.0
    %447 = vmatpush.xpose.msra.mxu0 0.0
    %448 = vmatpush.xpose.msra.mxu0 0.0
    %449 = vmatpush.xpose.msra.mxu0 0.0
    %450 = vmatpush.xpose.msra.mxu0 0.0
    %451 = vmatpush.xpose.msra.mxu0 %v434
    %452 = vmatmul.f32.gmra.mxu0 %v431
    %v453 = vpop.f32.mrf.mxu0
    %v454 = vadd.f32 0.0, %v453
    %455 = vdwg.mxu0
    %v456 = vmul.f32 %v454, 0.17677669
    %s457 = scalar_lea.vmem %s4, 32
    %v458 = vld [vmem:[%s457] sm:$0xff]
    %v459 = vadd.f32 %v456, %v458
    %v460 = vsel %vm156, %v459, -inf
    %461 = vmax.xlane.f32.xlu0 %v460
    %v462 = vpop.xlane.xlu0 %461
    %v463 = vsub.f32 %v459, %v462
    %v464 = vmul.f32 %v463, 1.442695
    %v465 = vpow.pop %v464
    %v466 = vsel %vm156, %v465, 0.0
    %467 = vadd.xlane.f32.xlu0 %v466
    %v468 = vpop.xlane.xlu0 %467
    %v469 = vrcp.pop %v468
    %v470 = vmul.f32 %v468, %v469
    %v471 = vsub.f32 2.0, %v470
    %v472 = vmul.f32 %v469, %v471
    %v473 = vmul.f32 %v465, %v472
    %v475 = vsel %vm156, %v473, 0
    %477 = vmatpush.msra.mxu0 0.0
    %478 = vmatpush.msra.mxu0 0.0
    %479 = vmatpush.msra.mxu0 0.0
    %480 = vmatpush.msra.mxu0 0.0
    %481 = vmatpush.msra.mxu0 0.0
    %482 = vmatpush.msra.mxu0 0.0
    %483 = vmatpush.msra.mxu0 0.0
    %484 = vmatpush.msra.mxu0 0.0
    %485 = vmatpush.msra.mxu0 0.0
    %486 = vmatpush.msra.mxu0 0.0
    %487 = vmatpush.msra.mxu0 0.0
    %488 = vmatpush.msra.mxu0 0.0
    %489 = vmatpush.msra.mxu0 0.0
    %490 = vmatpush.msra.mxu0 0.0
    %491 = vmatpush.msra.mxu0 0.0
    %492 = vmatpush.msra.mxu0 %v125
    %493 = vmatmul.f32.gmra.mxu0 %v475
    %v494 = vpop.f32.mrf.mxu0
    %v495 = vadd.f32 0.0, %v494
    %496 = vdwg.mxu0
    %497 = vst.msk [vmem:[#allocation2 + $0x8] sm:$0xff] %vm51, %v495
    %498 = vrot.lane.b32.xlu0 %v79, 96
    %v499 = vpop.permute.xlu0 %498
    %500 = vrot.lane.b32.xlu0 %v102, 96
    %v501 = vpop.permute.xlu0 %500
    %v502 = vsel %vm51, %v499, 0
    %v504 = vsel %vm51, %v501, 0
    %506 = vmatpush.xpose.msra.mxu0 0.0
    %507 = vmatpush.xpose.msra.mxu0 0.0
    %508 = vmatpush.xpose.msra.mxu0 0.0
    %509 = vmatpush.xpose.msra.mxu0 0.0
    %510 = vmatpush.xpose.msra.mxu0 0.0
    %511 = vmatpush.xpose.msra.mxu0 0.0
    %512 = vmatpush.xpose.msra.mxu0 0.0
    %513 = vmatpush.xpose.msra.mxu0 0.0
    %514 = vmatpush.xpose.msra.mxu0 0.0
    %515 = vmatpush.xpose.msra.mxu0 0.0
    %516 = vmatpush.xpose.msra.mxu0 0.0
    %517 = vmatpush.xpose.msra.mxu0 0.0
    %518 = vmatpush.xpose.msra.mxu0 0.0
    %519 = vmatpush.xpose.msra.mxu0 0.0
    %520 = vmatpush.xpose.msra.mxu0 0.0
    %521 = vmatpush.xpose.msra.mxu0 %v504
    %522 = vmatmul.f32.gmra.mxu0 %v502
    %v523 = vpop.f32.mrf.mxu0
    %v524 = vadd.f32 0.0, %v523
    %525 = vdwg.mxu0
    %v526 = vmul.f32 %v524, 0.17677669
    %s527 = scalar_lea.vmem %s4, 40
    %v528 = vld [vmem:[%s527] sm:$0xff]
    %v529 = vadd.f32 %v526, %v528
    %v530 = vsel %vm156, %v529, -inf
    %531 = vmax.xlane.f32.xlu0 %v530
    %v532 = vpop.xlane.xlu0 %531
    %v533 = vsub.f32 %v529, %v532
    %v534 = vmul.f32 %v533, 1.442695
    %v535 = vpow.pop %v534
    %v536 = vsel %vm156, %v535, 0.0
    %537 = vadd.xlane.f32.xlu0 %v536
    %v538 = vpop.xlane.xlu0 %537
    %v539 = vrcp.pop %v538
    %v540 = vmul.f32 %v538, %v539
    %v541 = vsub.f32 2.0, %v540
    %v542 = vmul.f32 %v539, %v541
    %v543 = vmul.f32 %v535, %v542
    %545 = vrot.lane.b32.xlu0 %v125, 96
    %v546 = vpop.permute.xlu0 %545
    %v549 = vsel %vm156, %v543, 0
    %551 = vmatpush.msra.mxu0 0.0
    %552 = vmatpush.msra.mxu0 0.0
    %553 = vmatpush.msra.mxu0 0.0
    %554 = vmatpush.msra.mxu0 0.0
    %555 = vmatpush.msra.mxu0 0.0
    %556 = vmatpush.msra.mxu0 0.0
    %557 = vmatpush.msra.mxu0 0.0
    %558 = vmatpush.msra.mxu0 0.0
    %559 = vmatpush.msra.mxu0 0.0
    %560 = vmatpush.msra.mxu0 0.0
    %561 = vmatpush.msra.mxu0 0.0
    %562 = vmatpush.msra.mxu0 0.0
    %563 = vmatpush.msra.mxu0 0.0
    %564 = vmatpush.msra.mxu0 0.0
    %565 = vmatpush.msra.mxu0 0.0
    %566 = vmatpush.msra.mxu0 %v546
    %567 = vmatmul.f32.gmra.mxu0 %v549
    %v568 = vpop.f32.mrf.mxu0
    %v569 = vadd.f32 0.0, %v568
    %570 = vdwg.mxu0
    %572 = vrot.lane.b32.xlu0 %v569, 32
    %v573 = vpop.permute.xlu0 %572
    %575 = vst.msk [vmem:[#allocation2 + $0x8] sm:$0xff] %vm272, %v573
    %576 = vrot.lane.b32.xlu0 %v79, 64
    %v577 = vpop.permute.xlu0 %576
    %578 = vrot.lane.b32.xlu0 %v102, 64
    %v579 = vpop.permute.xlu0 %578
    %v580 = vsel %vm51, %v577, 0
    %v582 = vsel %vm51, %v579, 0
    %584 = vmatpush.xpose.msra.mxu0 0.0
    %585 = vmatpush.xpose.msra.mxu0 0.0
    %586 = vmatpush.xpose.msra.mxu0 0.0
    %587 = vmatpush.xpose.msra.mxu0 0.0
    %588 = vmatpush.xpose.msra.mxu0 0.0
    %589 = vmatpush.xpose.msra.mxu0 0.0
    %590 = vmatpush.xpose.msra.mxu0 0.0
    %591 = vmatpush.xpose.msra.mxu0 0.0
    %592 = vmatpush.xpose.msra.mxu0 0.0
    %593 = vmatpush.xpose.msra.mxu0 0.0
    %594 = vmatpush.xpose.msra.mxu0 0.0
    %595 = vmatpush.xpose.msra.mxu0 0.0
    %596 = vmatpush.xpose.msra.mxu0 0.0
    %597 = vmatpush.xpose.msra.mxu0 0.0
    %598 = vmatpush.xpose.msra.mxu0 0.0
    %599 = vmatpush.xpose.msra.mxu0 %v582
    %600 = vmatmul.f32.gmra.mxu0 %v580
    %v601 = vpop.f32.mrf.mxu0
    %v602 = vadd.f32 0.0, %v601
    %603 = vdwg.mxu0
    %v604 = vmul.f32 %v602, 0.17677669
    %s605 = scalar_lea.vmem %s4, 48
    %v606 = vld [vmem:[%s605] sm:$0xff]
    %v607 = vadd.f32 %v604, %v606
    %v608 = vsel %vm156, %v607, -inf
    %609 = vmax.xlane.f32.xlu0 %v608
    %v610 = vpop.xlane.xlu0 %609
    %v611 = vsub.f32 %v607, %v610
    %v612 = vmul.f32 %v611, 1.442695
    %v613 = vpow.pop %v612
    %v614 = vsel %vm156, %v613, 0.0
    %615 = vadd.xlane.f32.xlu0 %v614
    %v616 = vpop.xlane.xlu0 %615
    %v617 = vrcp.pop %v616
    %v618 = vmul.f32 %v616, %v617
    %v619 = vsub.f32 2.0, %v618
    %v620 = vmul.f32 %v617, %v619
    %v621 = vmul.f32 %v613, %v620
    %622 = vrot.lane.b32.xlu0 %v125, 64
    %v623 = vpop.permute.xlu0 %622
    %v626 = vsel %vm156, %v621, 0
    %628 = vmatpush.msra.mxu0 0.0
    %629 = vmatpush.msra.mxu0 0.0
    %630 = vmatpush.msra.mxu0 0.0
    %631 = vmatpush.msra.mxu0 0.0
    %632 = vmatpush.msra.mxu0 0.0
    %633 = vmatpush.msra.mxu0 0.0
    %634 = vmatpush.msra.mxu0 0.0
    %635 = vmatpush.msra.mxu0 0.0
    %636 = vmatpush.msra.mxu0 0.0
    %637 = vmatpush.msra.mxu0 0.0
    %638 = vmatpush.msra.mxu0 0.0
    %639 = vmatpush.msra.mxu0 0.0
    %640 = vmatpush.msra.mxu0 0.0
    %641 = vmatpush.msra.mxu0 0.0
    %642 = vmatpush.msra.mxu0 0.0
    %643 = vmatpush.msra.mxu0 %v623
    %644 = vmatmul.f32.gmra.mxu0 %v626
    %v645 = vpop.f32.mrf.mxu0
    %v646 = vadd.f32 0.0, %v645
    %647 = vdwg.mxu0
    %649 = vrot.lane.b32.xlu0 %v646, 64
    %v650 = vpop.permute.xlu0 %649
    %652 = vst.msk [vmem:[#allocation2 + $0x8] sm:$0xff] %vm350, %v650
    %653 = vrot.lane.b32.xlu0 %v79, 32
    %v654 = vpop.permute.xlu0 %653
    %655 = vrot.lane.b32.xlu0 %v102, 32
    %v656 = vpop.permute.xlu0 %655
    %v657 = vsel %vm51, %v654, 0
    %v659 = vsel %vm51, %v656, 0
    %661 = vmatpush.xpose.msra.mxu0 0.0
    %662 = vmatpush.xpose.msra.mxu0 0.0
    %663 = vmatpush.xpose.msra.mxu0 0.0
    %664 = vmatpush.xpose.msra.mxu0 0.0
    %665 = vmatpush.xpose.msra.mxu0 0.0
    %666 = vmatpush.xpose.msra.mxu0 0.0
    %667 = vmatpush.xpose.msra.mxu0 0.0
    %668 = vmatpush.xpose.msra.mxu0 0.0
    %669 = vmatpush.xpose.msra.mxu0 0.0
    %670 = vmatpush.xpose.msra.mxu0 0.0
    %671 = vmatpush.xpose.msra.mxu0 0.0
    %672 = vmatpush.xpose.msra.mxu0 0.0
    %673 = vmatpush.xpose.msra.mxu0 0.0
    %674 = vmatpush.xpose.msra.mxu0 0.0
    %675 = vmatpush.xpose.msra.mxu0 0.0
    %676 = vmatpush.xpose.msra.mxu0 %v659
    %677 = vmatmul.f32.gmra.mxu0 %v657
    %v678 = vpop.f32.mrf.mxu0
    %v679 = vadd.f32 0.0, %v678
    %680 = vdwg.mxu0
    %v681 = vmul.f32 %v679, 0.17677669
    %s682 = scalar_lea.vmem %s4, 56
    %v683 = vld [vmem:[%s682] sm:$0xff]
    %v684 = vadd.f32 %v681, %v683
    %v685 = vsel %vm156, %v684, -inf
    %686 = vmax.xlane.f32.xlu0 %v685
    %v687 = vpop.xlane.xlu0 %686
    %v688 = vsub.f32 %v684, %v687
    %v689 = vmul.f32 %v688, 1.442695
    %v690 = vpow.pop %v689
    %v691 = vsel %vm156, %v690, 0.0
    %692 = vadd.xlane.f32.xlu0 %v691
    %v693 = vpop.xlane.xlu0 %692
    %v694 = vrcp.pop %v693
    %v695 = vmul.f32 %v693, %v694
    %v696 = vsub.f32 2.0, %v695
    %v697 = vmul.f32 %v694, %v696
    %v698 = vmul.f32 %v690, %v697
    %699 = vrot.lane.b32.xlu0 %v125, 32
    %v700 = vpop.permute.xlu0 %699
    %v703 = vsel %vm156, %v698, 0
    %705 = vmatpush.msra.mxu0 0.0
    %706 = vmatpush.msra.mxu0 0.0
    %707 = vmatpush.msra.mxu0 0.0
    %708 = vmatpush.msra.mxu0 0.0
    %709 = vmatpush.msra.mxu0 0.0
    %710 = vmatpush.msra.mxu0 0.0
    %711 = vmatpush.msra.mxu0 0.0
    %712 = vmatpush.msra.mxu0 0.0
    %713 = vmatpush.msra.mxu0 0.0
    %714 = vmatpush.msra.mxu0 0.0
    %715 = vmatpush.msra.mxu0 0.0
    %716 = vmatpush.msra.mxu0 0.0
    %717 = vmatpush.msra.mxu0 0.0
    %718 = vmatpush.msra.mxu0 0.0
    %719 = vmatpush.msra.mxu0 0.0
    %720 = vmatpush.msra.mxu0 %v700
    %721 = vmatmul.f32.gmra.mxu0 %v703
    %v722 = vpop.f32.mrf.mxu0
    %v723 = vadd.f32 0.0, %v722
    %724 = vdwg.mxu0
    %726 = vrot.lane.b32.xlu0 %v723, 96
    %v727 = vpop.permute.xlu0 %726
    %729 = vst.msk [vmem:[#allocation2 + $0x8] sm:$0xff] %vm428, %v727
    %v730 = vld [vmem:[#allocation2] sm:$0xff]
    %v731 = vld [vmem:[#allocation2 + $0x8] sm:$0xff]
    %v732 = vld [vmem:[%s2] sm:$0xff]
    %v733 = vld [vmem:[%s2 + $0x8] sm:$0xff]
    %v734 = vld [vmem:[%s2 + $0x10] sm:$0xff]
    %v735 = vld [vmem:[%s2 + $0x18] sm:$0xff]
    %v736 = vld [vmem:[%s2 + $0x20] sm:$0xff]
    %v737 = vld [vmem:[%s2 + $0x28] sm:$0xff]
    %v738 = vld [vmem:[%s2 + $0x30] sm:$0xff]
    %v739 = vld [vmem:[%s2 + $0x38] sm:$0xff]
    %v740 = vld [vmem:[%s2 + $0x40] sm:$0xff]
    %v741 = vld [vmem:[%s2 + $0x48] sm:$0xff]
    %v742 = vld [vmem:[%s2 + $0x50] sm:$0xff]
    %v743 = vld [vmem:[%s2 + $0x58] sm:$0xff]
    %v744 = vld [vmem:[%s2 + $0x60] sm:$0xff]
    %v745 = vld [vmem:[%s2 + $0x68] sm:$0xff]
    %v746 = vld [vmem:[%s2 + $0x70] sm:$0xff]
    %v747 = vld [vmem:[%s2 + $0x78] sm:$0xff]
    %v748 = vld [vmem:[%s3] sm:$0x1]
    %v750 = vperm.slane %v748, 0
    %752 = vmatpush.msra.mxu0 %v747
    %753 = vmatpush.msra.mxu0 %v746
    %754 = vmatpush.msra.mxu0 %v745
    %755 = vmatpush.msra.mxu0 %v744
    %756 = vmatpush.msra.mxu0 %v743
    %757 = vmatpush.msra.mxu0 %v742
    %758 = vmatpush.msra.mxu0 %v741
    %759 = vmatpush.msra.mxu0 %v740
    %760 = vmatpush.msra.mxu0 %v739
    %761 = vmatpush.msra.mxu0 %v738
    %762 = vmatpush.msra.mxu0 %v737
    %763 = vmatpush.msra.mxu0 %v736
    %764 = vmatpush.msra.mxu0 %v735
    %765 = vmatpush.msra.mxu0 %v734
    %766 = vmatpush.msra.mxu0 %v733
    %767 = vmatpush.msra.mxu0 %v732
    %768 = vmatmul.f32.gmra.mxu0 %v730
    %v769 = vpop.f32.mrf.mxu0
    %v770 = vadd.f32 %v750, %v769
    %771 = vmatmul.f32.gmra.mxu0 %v731
    %v772 = vpop.f32.mrf.mxu0
    %v773 = vadd.f32 %v750, %v772
    %774 = vdwg.mxu0
    %775 = vst.msk [vmem:[#allocation6] sm:$0xff] %vm51, %v770
    %776 = vst.msk [vmem:[#allocation6 + $0x8] sm:$0xff] %vm51, %v773
    // Predicated region
    $region26: #{tpu_custom_call.1} parent=1 // pred_check
      _
    $region27: #{tpu_custom_call.1} parent=1 // pred_check_branch
      %778 = sbr.rel (0) target = $region29
    $region28: #{tpu_custom_call.1} parent=1 // pred_region
      %780 = vsyncadd [#allocation5], 0
      %s781 = sshll.u32 [#allocation6], 4
      %s782 = int_to_ptr.vmem [resolvable:$true] %s781
      %s783 = sshll.u32 %s5, 4
      %s784 = int_to_ptr.hbm [resolvable:$true] %s783
      %789 = dma.vmem_to_hbm [thread:$0]  %s782, 256, %s784, [#allocation5], 128, 128, 8
    $region29: #{tpu_custom_call.1} parent=1 // pred_fallthru
      _
    // Predicated region
    $region30: #{tpu_custom_call.1} parent=1 // pred_check
      _
    $region31: #{tpu_custom_call.1} parent=1 // pred_check_branch
      %791 = sbr.rel (0) target = $region33
    $region32: #{tpu_custom_call.1} parent=1 // pred_region
      %793 = dma.done [#allocation5], 256
    $region33: #{tpu_custom_call.1} parent=1 // pred_fallthru
      _
    %794 = vsyncpa [#allocation4], 1
    %795 = vsyncpa [#allocation5], 1

</llo_original>
